<compile_context>
chip_gen: v5e
topology: v5e:2x2
jax: 0.10.0
libtpu: 0.0.40
codegen_flags: <defaults>
</compile_context>

<pallas_src>
import jax
import jax.numpy as jnp
from jax.experimental import pallas as pl
from jax.experimental.pallas import tpu as pltpu


def _mish_kernel(x_ref, o_ref):
    x = x_ref[...]
    xf = x.astype(jnp.float32)  # v5e VPU/EUP have no bf16 path; compute in f32.

    # tanh(softplus(x)) = (u^2 + 2u) / (u^2 + 2u + 2) with u = e^x.
    # Rewritten in t = exp(-|x|) in (0, 1] for numerical stability:
    #   x >= 0:  (1 + 2t)       / (1 + 2t + 2t^2)
    #   x <  0:  (t^2 + 2t)     / (t^2 + 2t + 2)
    # Single EUP exp + one divide; everything else is VPU add/mul/select.
    t = jnp.exp(-jnp.abs(xf))
    t2 = t * t
    pos = xf >= 0.0
    num = jnp.where(pos, 1.0 + 2.0 * t, t2 + 2.0 * t)
    den = jnp.where(pos, 1.0 + 2.0 * t + 2.0 * t2, t2 + 2.0 * t + 2.0)
    o_ref[...] = (xf * num / den).astype(o_ref.dtype)


def mish(x, *, lanes=1024, block_rows=512):
    """Elementwise Mish. Accepts any shape; computed on TPU via Pallas."""
    orig_shape = x.shape
    orig_dtype = x.dtype

    flat = x.reshape(-1)
    n = flat.shape[0]

    # Pad only up to a multiple of `lanes` (skipped entirely when aligned).
    n_pad = pl.cdiv(n, lanes) * lanes
    if n_pad != n:
        flat = jnp.pad(flat, (0, n_pad - n))
    rows = n_pad // lanes
    x2d = flat.reshape(rows, lanes)

    # Block rows: multiple of 8 (sublane), or the full extent for small inputs.
    if rows <= block_rows:
        br = rows
        grid = (1,)
    else:
        br = block_rows
        grid = (pl.cdiv(rows, br),)  # ragged last block handled by Pallas

    itemsize = jnp.dtype(orig_dtype).itemsize
    out2d = pl.pallas_call(
        _mish_kernel,
        out_shape=jax.ShapeDtypeStruct((rows, lanes), orig_dtype),
        grid_spec=pltpu.PrefetchScalarGridSpec(
            num_scalar_prefetch=0,
            grid=grid,
            in_specs=[pl.BlockSpec((br, lanes), lambda i: (i, 0))],
            out_specs=pl.BlockSpec((br, lanes), lambda i: (i, 0)),
        ),
        compiler_params=pltpu.CompilerParams(
            dimension_semantics=("parallel",),
        ),
        cost_estimate=pl.CostEstimate(
            flops=8 * n_pad,
            transcendentals=2 * n_pad,
            bytes_accessed=2 * n_pad * itemsize,
        ),
    )(x2d)

    if n_pad != n:
        return out2d.reshape(-1)[:n].reshape(orig_shape)
    return out2d.reshape(orig_shape)


def mish_ref(x):
    xf = x.astype(jnp.float32)
    return (xf * jnp.tanh(jax.nn.softplus(xf))).astype(x.dtype)


if __name__ == "__main__":
    key = jax.random.PRNGKey(0)

    # NCHW input, consistent with CSPdarknet usage of Mish after convs.
    x = jax.random.normal(key, (2, 4, 16, 16), dtype=jnp.float32) * 3.0
    y = mish(x)
    jax.block_until_ready(y)
    y_ref = mish_ref(x)
    assert y.shape == x.shape and y.dtype == x.dtype
    assert jnp.allclose(y, y_ref, atol=1e-5, rtol=1e-5)

    # Small misaligned shape exercises the (tiny) pad/slice path.
    x_odd = jax.random.normal(jax.random.PRNGKey(1), (2, 3, 7, 5),
                              dtype=jnp.float32) * 3.0
    y_odd = mish(x_odd)
    jax.block_until_ready(y_odd)
    assert y_odd.shape == x_odd.shape
    assert jnp.allclose(y_odd, mish_ref(x_odd), atol=1e-5, rtol=1e-5)

    print("KERNEL_OK")
</pallas_src>

<mosaic_0001>
module attributes {stable_mosaic.version = 11 : i64} {
  func.func @_mish_kernel(%arg0: i32, %arg1: memref<2x1024xf32, #tpu.memory_space<vmem>>, %arg2: memref<2x1024xf32, #tpu.memory_space<vmem>>) attributes {dimension_semantics = [#tpu.dimension_semantics<parallel>], iteration_bounds = array<i64: 1>, scalar_prefetch = 0 : i64, scratch_operands = 0 : i64, tpu.core_type = #tpu.core_type<tc>, window_params = [{transform_indices = @transform_0, window_bounds = array<i64: 2, 1024>}, {transform_indices = @transform_1, window_bounds = array<i64: 2, 1024>}]} {
    %c0 = arith.constant 0 : index
    %c0_0 = arith.constant 0 : index
    %0 = vector.load %arg1[%c0, %c0_0] : memref<2x1024xf32, #tpu.memory_space<vmem>>, vector<2x1024xf32>
    %1 = math.absf %0 : vector<2x1024xf32>
    %cst = arith.constant 0.000000e+00 : f32
    %2 = vector.broadcast %cst : f32 to vector<2x1024xf32>
    %3 = arith.subf %2, %1 : vector<2x1024xf32>
    %4 = math.exp %3 : vector<2x1024xf32>
    %5 = arith.mulf %4, %4 : vector<2x1024xf32>
    %cst_1 = arith.constant 0.000000e+00 : f32
    %6 = vector.broadcast %cst_1 : f32 to vector<2x1024xf32>
    %7 = arith.cmpf oge, %0, %6 : vector<2x1024xf32>
    %cst_2 = arith.constant 2.000000e+00 : f32
    %8 = vector.broadcast %cst_2 : f32 to vector<2x1024xf32>
    %9 = arith.mulf %8, %4 : vector<2x1024xf32>
    %cst_3 = arith.constant 1.000000e+00 : f32
    %10 = vector.broadcast %cst_3 : f32 to vector<2x1024xf32>
    %11 = arith.addf %10, %9 : vector<2x1024xf32>
    %cst_4 = arith.constant 2.000000e+00 : f32
    %12 = vector.broadcast %cst_4 : f32 to vector<2x1024xf32>
    %13 = arith.mulf %12, %4 : vector<2x1024xf32>
    %14 = arith.addf %5, %13 : vector<2x1024xf32>
    %15 = arith.select %7, %11, %14 : vector<2x1024xi1>, vector<2x1024xf32>
    %cst_5 = arith.constant 2.000000e+00 : f32
    %16 = vector.broadcast %cst_5 : f32 to vector<2x1024xf32>
    %17 = arith.mulf %16, %4 : vector<2x1024xf32>
    %cst_6 = arith.constant 1.000000e+00 : f32
    %18 = vector.broadcast %cst_6 : f32 to vector<2x1024xf32>
    %19 = arith.addf %18, %17 : vector<2x1024xf32>
    %cst_7 = arith.constant 2.000000e+00 : f32
    %20 = vector.broadcast %cst_7 : f32 to vector<2x1024xf32>
    %21 = arith.mulf %20, %5 : vector<2x1024xf32>
    %22 = arith.addf %19, %21 : vector<2x1024xf32>
    %cst_8 = arith.constant 2.000000e+00 : f32
    %23 = vector.broadcast %cst_8 : f32 to vector<2x1024xf32>
    %24 = arith.mulf %23, %4 : vector<2x1024xf32>
    %25 = arith.addf %5, %24 : vector<2x1024xf32>
    %cst_9 = arith.constant 2.000000e+00 : f32
    %26 = vector.broadcast %cst_9 : f32 to vector<2x1024xf32>
    %27 = arith.addf %25, %26 : vector<2x1024xf32>
    %28 = arith.select %7, %22, %27 : vector<2x1024xi1>, vector<2x1024xf32>
    %29 = arith.mulf %0, %15 : vector<2x1024xf32>
    %30 = arith.divf %29, %28 : vector<2x1024xf32>
    %c0_10 = arith.constant 0 : index
    %c0_11 = arith.constant 0 : index
    %31 = vector.load %arg2[%c0_10, %c0_11] : memref<2x1024xf32, #tpu.memory_space<vmem>>, vector<2x1024xf32>
    tpu.vector_store %arg2[%c0_10, %c0_11], %30 {strides = array<i32>} : memref<2x1024xf32, #tpu.memory_space<vmem>>, vector<2x1024xf32>,
    return
  }
  func.func @transform_0(%arg0: i32) -> (i32, i32) {
    %c0_i32 = arith.constant 0 : i32
    %c0_i32_0 = arith.constant 0 : i32
    return %arg0, %c0_i32 : i32, i32
  }
  func.func @transform_1(%arg0: i32) -> (i32, i32) {
    %c0_i32 = arith.constant 0 : i32
    %c0_i32_0 = arith.constant 0 : i32
    return %arg0, %c0_i32 : i32, i32
  }
}

</mosaic_0001>

<llo_original>
// kernel: tpu_custom_call.1
$region0: #{tpu_custom_call.1}
  #allocation0 [shape = 'u32[]', space=smem, size = 0x4, offset = 0x4, fixed_abs, tag = 'smem constant byte address 0x4 - core index']
  #allocation1 [shape = 'u32[72,128]{1,0:T(1,128)}', space=vmem, size = 0x9000, scoped, tag = 'internal scratch']
  %s0 = inlined_call_operand.hbm [shape: f32[2,1024], index: 0, kind: input, shape index: {}]
  %s1 = inlined_call_operand.hbm [shape: f32[2,1024], index: 1, kind: output, shape index: {}]
  %s2 = sld [smem:[#allocation0]]
  $region18: #{tpu_custom_call.1} parent=0
    _
  %s4 = ssub.s32 1, %s2
  %s5 = scalar_select 0, %s4, %s2
  $region1: #{tpu_custom_call.1} parent=0
    #allocation2 [shape = 'u8[8192]{0}', space=vmem, size = 0x2000, scoped, tag = 'input window, operand 0, single buffered']
    #allocation3 [shape = 's32[1]{0}', space=sflag, size = 0x4, scoped, tag = 'scoped memory for tpu_custom_call.1']
    #allocation4 [shape = 's32[1]{0}', space=sflag, size = 0x4, scoped, tag = 'scoped memory for tpu_custom_call.1']
    #allocation5 [shape = 'u8[8192]{0}', space=vmem, size = 0x2000, scoped, tag = 'output window, operand 0, single buffered']
    %6 = vsyncpa [#allocation3], 0
    %7 = vsyncpa [#allocation4], 0
    // Predicated region
    $region2: #{tpu_custom_call.1} parent=1 // pred_check
      _
    $region3: #{tpu_custom_call.1} parent=1 // pred_check_branch
      %9 = sbr.rel (0) target = $region5
    $region4: #{tpu_custom_call.1} parent=1 // pred_region
      %11 = vsyncadd [#allocation3], 0
      %s13 = sshll.u32 %s0, 4
      %s14 = int_to_ptr.hbm [resolvable:$true] %s13
      %s15 = sshll.u32 [#allocation2], 4
      %s16 = int_to_ptr.vmem [resolvable:$true] %s15
      %18 = dma.hbm_to_vmem [thread:$0]  %s14, 256, %s16, [#allocation3]
    $region5: #{tpu_custom_call.1} parent=1 // pred_fallthru
      _
    // Predicated region
    $region6: #{tpu_custom_call.1} parent=1 // pred_check
      _
    $region7: #{tpu_custom_call.1} parent=1 // pred_check_branch
      %20 = sbr.rel (0) target = $region9
    $region8: #{tpu_custom_call.1} parent=1 // pred_region
      %22 = dma.done [#allocation3], 256
    $region9: #{tpu_custom_call.1} parent=1 // pred_fallthru
      _
    %v23 = vld [vmem:[#allocation2] sm:$0xff]
    %v24 = vld [vmem:[#allocation2 + $0x8] sm:$0xff]
    %v25 = vand.u32 2147483647, %v23
    %v26 = vand.u32 2147483647, %v24
    %v27 = vsub.f32 0.0, %v25
    %v28 = vsub.f32 0.0, %v26
    %v29 = vmul.f32 %v27, 1.442695
    %v30 = vpow.pop %v29
    %v31 = vmul.f32 %v28, 1.442695
    %v32 = vpow.pop %v31
    %v33 = vmul.f32 %v30, %v30
    %v34 = vmul.f32 %v32, %v32
    %vm35 = vcmp.ge.f32.partialorder %v23, 0.0
    %vm36 = vcmp.ge.f32.partialorder %v24, 0.0
    %v37 = vmul.f32 %v30, 2.0
    %v38 = vmul.f32 %v32, 2.0
    %v39 = vadd.f32 %v37, 1.0
    %v40 = vadd.f32 %v38, 1.0
    %v41 = vadd.f32 %v33, %v37
    %v42 = vadd.f32 %v34, %v38
    %v43 = vsel %vm35, %v39, %v41
    %v44 = vsel %vm36, %v40, %v42
    %v45 = vmul.f32 %v33, 2.0
    %v46 = vmul.f32 %v34, 2.0
    %v47 = vadd.f32 %v39, %v45
    %v48 = vadd.f32 %v40, %v46
    %v49 = vadd.f32 %v41, 2.0
    %v50 = vadd.f32 %v42, 2.0
    %v51 = vsel %vm35, %v47, %v49
    %v52 = vsel %vm36, %v48, %v50
    %v53 = vmul.f32 %v23, %v43
    %v54 = vmul.f32 %v24, %v44
    %v55 = vrcp.pop %v51
    %v56 = vmul.f32 %v51, %v55
    %v57 = vsub.f32 1.0, %v56
    %v58 = vmul.f32 %v55, %v57
    %v59 = vadd.f32 %v55, %v58
    %vm60 = vweird.f32 %v51
    %vm61 = vweird.f32 %v55
    %vm62 = vmor %vm60, %vm61
    %v63 = vsel %vm62, %v55, %v59
    %v64 = vand.u32 2147483647, %v51
    %vm65 = vcmp.eq.f32.partialorder %v64, 8.507059e+37
    %v66 = vand.u32 %v51, 2147483648
    %v67 = vor.u32 1.1754944e-38, %v66
    %v68 = vsel %vm65, %v67, %v63
    %v69 = vmul.f32 %v53, %v68
    %v70 = vrcp.pop %v52
    %v71 = vmul.f32 %v52, %v70
    %v72 = vsub.f32 1.0, %v71
    %v73 = vmul.f32 %v70, %v72
    %v74 = vadd.f32 %v70, %v73
    %vm75 = vweird.f32 %v52
    %vm76 = vweird.f32 %v70
    %vm77 = vmor %vm75, %vm76
    %v78 = vsel %vm77, %v70, %v74
    %v79 = vand.u32 2147483647, %v52
    %vm80 = vcmp.eq.f32.partialorder %v79, 8.507059e+37
    %v81 = vand.u32 %v52, 2147483648
    %v82 = vor.u32 1.1754944e-38, %v81
    %v83 = vsel %vm80, %v82, %v78
    %v84 = vmul.f32 %v54, %v83
    %85 = vst [vmem:[#allocation5] sm:$0xff] %v69
    %86 = vst [vmem:[#allocation5 + $0x8] sm:$0xff] %v84
    // Predicated region
    $region10: #{tpu_custom_call.1} parent=1 // pred_check
      _
    $region11: #{tpu_custom_call.1} parent=1 // pred_check_branch
      %88 = sbr.rel (0) target = $region13
    $region12: #{tpu_custom_call.1} parent=1 // pred_region
      %90 = vsyncadd [#allocation4], 0
      %s92 = sshll.u32 [#allocation5], 4
      %s93 = int_to_ptr.vmem [resolvable:$true] %s92
      %s94 = sshll.u32 %s1, 4
      %s95 = int_to_ptr.hbm [resolvable:$true] %s94
      %97 = dma.vmem_to_hbm [thread:$0]  %s93, 256, %s95, [#allocation4]
    $region13: #{tpu_custom_call.1} parent=1 // pred_fallthru
      _
    // Predicated region
    $region14: #{tpu_custom_call.1} parent=1 // pred_check
      _
    $region15: #{tpu_custom_call.1} parent=1 // pred_check_branch
      %99 = sbr.rel (0) target = $region17
    $region16: #{tpu_custom_call.1} parent=1 // pred_region
      %101 = dma.done [#allocation4], 256
    $region17: #{tpu_custom_call.1} parent=1 // pred_fallthru
      _
    %102 = vsyncpa [#allocation3], 1
    %103 = vsyncpa [#allocation4], 1

</llo_original>
